<compile_context>
chip_gen: v7x
topology: tpu7x:2x2x1
jax: 0.10.0
libtpu: 0.0.40
codegen_flags: <defaults>
</compile_context>

<pallas_src>
import functools
import math

import jax
import jax.numpy as jnp
from jax.experimental import pallas as pl
from jax.experimental.pallas import tpu as pltpu

D_MODEL = 32
D_DETECTIONS = 4
NORMALIZATION_CONSTANT = 10.0
GAUSS_SCALE = 1.0

_VMEM_SPEC = pl.BlockSpec(memory_space=pltpu.MemorySpace.VMEM)  # whole array in VMEM


# ----------------------------------------------------------------------------
# kernels
# ----------------------------------------------------------------------------
def _preproc_kernel(x_ref, w_ref, o_ref, *, inv_norm):
    """out = (src * inv_norm) @ W1   (bias-free linear), fused scale + matmul."""
    x = x_ref[...].astype(jnp.float32) * inv_norm
    o_ref[...] = jnp.dot(
        x, w_ref[...], preferred_element_type=jnp.float32
    ).astype(o_ref.dtype)


def _preproc_fourier_kernel(x_ref, gb_ref, ws_ref, wc_ref, o_ref):
    """Fourier-feature path:
         z   = (src * 2*pi) @ gauss_B[:, :d_out]
         out = sin(z) @ W1[:d_out, :] + cos(z) @ W1[d_out:, :]
       (== cat([sin(z), cos(z)], -1) @ W1, without the lane concat)."""
    x = x_ref[...].astype(jnp.float32) * (2.0 * math.pi)
    z = jnp.dot(x, gb_ref[...], preferred_element_type=jnp.float32)
    o = (jnp.dot(jnp.sin(z), ws_ref[...], preferred_element_type=jnp.float32)
         + jnp.dot(jnp.cos(z), wc_ref[...], preferred_element_type=jnp.float32))
    o_ref[...] = o.astype(o_ref.dtype)


# ----------------------------------------------------------------------------
# parameters (deterministic synthetic init; shapes follow the torch module,
# weights stored (in_features, out_features) i.e. torch_weight.T)
# ----------------------------------------------------------------------------
def init_params(key, *, use_fourier_feat=False, gauss_scale=GAUSS_SCALE):
    k1, k2 = jax.random.split(key)
    if use_fourier_feat:
        gauss_B = jax.random.normal(
            k1, (D_DETECTIONS, D_MODEL // 2), jnp.float32) * gauss_scale
        w1 = jax.random.normal(
            k2, (D_MODEL, D_MODEL), jnp.float32) / math.sqrt(D_MODEL)
        return dict(gauss_B=gauss_B, w1=w1)
    w1 = jax.random.normal(
        k2, (D_DETECTIONS, D_MODEL), jnp.float32) / math.sqrt(D_DETECTIONS)
    return dict(w1=w1)


# ----------------------------------------------------------------------------
# forward (matches PreProccessor.forward)
# ----------------------------------------------------------------------------
def pre_processor_forward(params, src, *, normalization_constant,
                          use_fourier_feat=False):
    bs, n_meas, d_det = src.shape
    x2d = src.reshape(bs * n_meas, d_det)        # fold batch into sublanes
    d_model = params["w1"].shape[1]

    if use_fourier_feat:
        d_out = params["w1"].shape[0] // 2       # d_model // 2
        gb = params["gauss_B"][:, :d_out]
        w_sin = params["w1"][:d_out, :]          # split once, outside the kernel
        w_cos = params["w1"][d_out:, :]
        out = pl.pallas_call(
            _preproc_fourier_kernel,
            out_shape=jax.ShapeDtypeStruct((bs * n_meas, d_model), src.dtype),
            in_specs=[_VMEM_SPEC, _VMEM_SPEC, _VMEM_SPEC, _VMEM_SPEC],
            out_specs=_VMEM_SPEC,
        )(x2d, gb, w_sin, w_cos)
    else:
        out = pl.pallas_call(
            functools.partial(_preproc_kernel,
                              inv_norm=1.0 / float(normalization_constant)),
            out_shape=jax.ShapeDtypeStruct((bs * n_meas, d_model), src.dtype),
            in_specs=[_VMEM_SPEC, _VMEM_SPEC],
            out_specs=_VMEM_SPEC,
        )(x2d, params["w1"])

    return out.reshape(bs, n_meas, d_model)


# ----------------------------------------------------------------------------
# pure-JAX reference (mirror of the torch forward) for correctness check
# ----------------------------------------------------------------------------
def _ref_forward(params, src, *, normalization_constant, use_fourier_feat=False):
    out = src / normalization_constant
    if use_fourier_feat:
        d_out = params["w1"].shape[0] // 2
        out = src * 2.0 * math.pi
        out = out.reshape(-1, src.shape[-1]) @ params["gauss_B"][:, :d_out]
        out = out.reshape(src.shape[0], src.shape[1], d_out)
        out = jnp.concatenate([jnp.sin(out), jnp.cos(out)], axis=-1)
    return out @ params["w1"]


# ----------------------------------------------------------------------------
if __name__ == "__main__":
    key = jax.random.PRNGKey(0)
    kp, kx = jax.random.split(key)

    bs, n_meas = 2, 8
    src = jax.random.normal(kx, (bs, n_meas, D_DETECTIONS), jnp.float32)

    # plain path (use_fourier_feat=False, the module default)
    p_plain = init_params(kp, use_fourier_feat=False)
    out_plain = pre_processor_forward(
        p_plain, src,
        normalization_constant=NORMALIZATION_CONSTANT, use_fourier_feat=False)

    # fourier-feature path
    p_four = init_params(kp, use_fourier_feat=True)
    out_four = pre_processor_forward(
        p_four, src,
        normalization_constant=NORMALIZATION_CONSTANT, use_fourier_feat=True)

    jax.block_until_ready((out_plain, out_four))

    assert out_plain.shape == (bs, n_meas, D_MODEL)
    assert out_four.shape == (bs, n_meas, D_MODEL)

    ref_plain = _ref_forward(p_plain, src,
                             normalization_constant=NORMALIZATION_CONSTANT,
                             use_fourier_feat=False)
    ref_four = _ref_forward(p_four, src,
                            normalization_constant=NORMALIZATION_CONSTANT,
                            use_fourier_feat=True)
    assert bool(jnp.allclose(out_plain, ref_plain, atol=1e-5, rtol=1e-5))
    assert bool(jnp.allclose(out_four, ref_four, atol=1e-4, rtol=1e-4))
    assert bool(jnp.all(jnp.isfinite(out_plain)))
    assert bool(jnp.all(jnp.isfinite(out_four)))

    print("KERNEL_OK")
</pallas_src>

<mosaic_0001>
module attributes {stable_mosaic.version = 11 : i64} {
  func.func @_preproc_kernel(%arg0: memref<16x4xf32, #tpu.memory_space<vmem>>, %arg1: memref<4x32xf32, #tpu.memory_space<vmem>>, %arg2: memref<16x32xf32, #tpu.memory_space<vmem>>) attributes {dimension_semantics = [], scalar_prefetch = 0 : i64, scratch_operands = 0 : i64, tpu.core_type = #tpu.core_type<tc>} {
    %c0 = arith.constant 0 : index
    %c0_0 = arith.constant 0 : index
    %0 = vector.load %arg0[%c0, %c0_0] : memref<16x4xf32, #tpu.memory_space<vmem>>, vector<16x4xf32>
    %cst = arith.constant 1.000000e-01 : f32
    %1 = vector.broadcast %cst : f32 to vector<16x4xf32>
    %2 = arith.mulf %0, %1 : vector<16x4xf32>
    %c0_1 = arith.constant 0 : index
    %c0_2 = arith.constant 0 : index
    %3 = vector.load %arg1[%c0_1, %c0_2] : memref<4x32xf32, #tpu.memory_space<vmem>>, vector<4x32xf32>
    %cst_3 = arith.constant dense<0.000000e+00> : vector<16x32xf32>
    %4 = tpu.matmul %2, %3, %cst_3 {dimension_numbers = #tpu.dot_dimension_numbers<[1], [0], [0], [1], [0, 0, 1, 1], [], []>} : vector<16x4xf32>, vector<4x32xf32>, vector<16x32xf32> -> vector<16x32xf32>
    %c0_4 = arith.constant 0 : index
    %c0_5 = arith.constant 0 : index
    %5 = vector.load %arg2[%c0_4, %c0_5] : memref<16x32xf32, #tpu.memory_space<vmem>>, vector<16x32xf32>
    tpu.vector_store %arg2[%c0_4, %c0_5], %4 {strides = array<i32>} : memref<16x32xf32, #tpu.memory_space<vmem>>, vector<16x32xf32>,
    return
  }
}

</mosaic_0001>

<llo_original>
// kernel: tpu_custom_call.1
$region0: #{tpu_custom_call.1}
  #allocation0 [shape = 'u32[]', space=smem, size = 0x4, offset = 0x4, fixed_abs, tag = 'smem constant byte address 0x4 - core index']
  #allocation1 [shape = 'u32[144,128]{1,0:T(1,128)}', space=vmem, size = 0x12000, scoped, tag = 'internal scratch']
  %s0 = inlined_call_operand.vmem [shape: f32[16,4], index: 0, kind: input, shape index: {}]
  %s1 = inlined_call_operand.vmem [shape: f32[4,32], index: 1, kind: input, shape index: {}]
  %s2 = inlined_call_operand.hbm [shape: f32[16,32], index: 2, kind: output, shape index: {}]
  %s3 = sld [smem:[#allocation0]]
  $region18: #{tpu_custom_call.1} parent=0
    _
  %s5 = ssub.s32 1, %s3
  %s6 = scalar_select 0, %s5, %s3
  $region1: #{tpu_custom_call.1} parent=0
    #allocation2 [shape = 'u8[8192]{0}', space=vmem, size = 0x2000, scoped, tag = 'output window, operand 0, single buffered']
    #allocation3 [shape = 's32[1]{0}', space=sflag, size = 0x4, scoped, tag = 'scoped memory for tpu_custom_call.1']
    %7 = vsyncpa [#allocation3], 0
    // Predicated region
    $region2: #{tpu_custom_call.1} parent=1 // pred_check
      _
    $region3: #{tpu_custom_call.1} parent=1 // pred_check_branch
      %9 = sbr.rel (0) target = $region5
    $region4: #{tpu_custom_call.1} parent=1 // pred_region
      _
    $region5: #{tpu_custom_call.1} parent=1 // pred_fallthru
      _
    // Predicated region
    $region6: #{tpu_custom_call.1} parent=1 // pred_check
      _
    $region7: #{tpu_custom_call.1} parent=1 // pred_check_branch
      %11 = sbr.rel (0) target = $region9
    $region8: #{tpu_custom_call.1} parent=1 // pred_region
      _
    $region9: #{tpu_custom_call.1} parent=1 // pred_fallthru
      _
    %v12 = vld [vmem:[%s0] sm:$0xff]
    %v13 = vld [vmem:[%s0 + $0x8] sm:$0xff]
    %v14 = vmul.f32 %v12, 0.1
    %v15 = vmul.f32 %v13, 0.1
    %v16 = vld [vmem:[%s1] sm:$0xf]
    %vm17 = vcmask 31744
    %v19 = vsel %vm17, %v14, 0
    %v22 = vsel %vm17, %v15, 0
    %vm24 = vcmask 1043456
    %v26 = vsel %vm24, %v16, 0
    %28 = vmatprep.subr.mxu0 0.0
    %29 = vmatpush1.msra.mxu0 %v26
    %30 = vmatprep.subr.mxu0 0.0
    %31 = vmatpush1.msra.mxu0 0.0
    %32 = vmatprep.subr.mxu0 0.0
    %33 = vmatpush1.msra.mxu0 0.0
    %34 = vmatprep.subr.mxu0 0.0
    %35 = vmatpush1.msra.mxu0 0.0
    %36 = vmatprep.subr.mxu0 0.0
    %37 = vmatpush1.msra.mxu0 0.0
    %38 = vmatprep.subr.mxu0 0.0
    %39 = vmatpush1.msra.mxu0 0.0
    %40 = vmatprep.subr.mxu0 0.0
    %41 = vmatpush1.msra.mxu0 0.0
    %42 = vmatprep.subr.mxu0 0.0
    %43 = vmatpush1.msra.mxu0 0.0
    %44 = vmatprep.subr.mxu0 0.0
    %45 = vmatpush1.msra.mxu0 0.0
    %46 = vmatprep.subr.mxu0 0.0
    %47 = vmatpush1.msra.mxu0 0.0
    %48 = vmatprep.subr.mxu0 0.0
    %49 = vmatpush1.msra.mxu0 0.0
    %50 = vmatprep.subr.mxu0 0.0
    %51 = vmatpush1.msra.mxu0 0.0
    %52 = vmatprep.subr.mxu0 0.0
    %53 = vmatpush1.msra.mxu0 0.0
    %54 = vmatprep.subr.mxu0 0.0
    %55 = vmatpush1.msra.mxu0 0.0
    %56 = vmatprep.subr.mxu0 0.0
    %57 = vmatpush1.msra.mxu0 0.0
    %58 = vmatprep.subr.mxu0 0.0
    %59 = vmatpush1.msra.mxu0 0.0
    %60 = vmatprep.subr.mxu0 0.0
    %61 = vmatpush1.msra.mxu0 0.0
    %62 = vmatprep.subr.mxu0 0.0
    %63 = vmatpush1.msra.mxu0 0.0
    %64 = vmatprep.subr.mxu0 0.0
    %65 = vmatpush1.msra.mxu0 0.0
    %66 = vmatprep.subr.mxu0 0.0
    %67 = vmatpush1.msra.mxu0 0.0
    %68 = vmatprep.subr.mxu0 0.0
    %69 = vmatpush1.msra.mxu0 0.0
    %70 = vmatprep.subr.mxu0 0.0
    %71 = vmatpush1.msra.mxu0 0.0
    %72 = vmatprep.subr.mxu0 0.0
    %73 = vmatpush1.msra.mxu0 0.0
    %74 = vmatprep.subr.mxu0 0.0
    %75 = vmatpush1.msra.mxu0 0.0
    %76 = vmatprep.subr.mxu0 0.0
    %77 = vmatpush1.msra.mxu0 0.0
    %78 = vmatprep.subr.mxu0 0.0
    %79 = vmatpush1.msra.mxu0 0.0
    %80 = vmatprep.subr.mxu0 0.0
    %81 = vmatpush1.msra.mxu0 0.0
    %82 = vmatprep.subr.mxu0 0.0
    %83 = vmatpush1.msra.mxu0 0.0
    %84 = vmatprep.subr.mxu0 0.0
    %85 = vmatpush1.msra.mxu0 0.0
    %86 = vmatprep.subr.mxu0 0.0
    %87 = vmatpush1.msra.mxu0 0.0
    %88 = vmatprep.subr.mxu0 0.0
    %89 = vmatpush1.msra.mxu0 0.0
    %90 = vmatprep.subr.mxu0 0.0
    %91 = vmatpush1.msra.mxu0 0.0
    %92 = vmatprep.mubr.f32.mxu0 0.0
    %93 = vmatmul.mubr.f32.gmra.mrb[0].mxu0 %v19
    %v94 = vpop.f32.mrb[0].mxu0
    %v95 = vadd.f32 0.0, %v94
    %v96 = vpop.f32.mrb[0].mxu0
    %97 = vmatprep.mubr.f32.mxu0 0.0
    %98 = vmatmul.mubr.f32.gmra.mrb[0].mxu0 %v22
    %v99 = vpop.f32.mrb[0].mxu0
    %v100 = vadd.f32 0.0, %v99
    %v101 = vpop.f32.mrb[0].mxu0
    %102 = vdwg.mxu0
    %vm103 = vcmask 261120
    %104 = vst.msk [vmem:[#allocation2] sm:$0xff] %vm103, %v95
    %105 = vst.msk [vmem:[#allocation2 + $0x8] sm:$0xff] %vm103, %v100
    // Predicated region
    $region10: #{tpu_custom_call.1} parent=1 // pred_check
      _
    $region11: #{tpu_custom_call.1} parent=1 // pred_check_branch
      %107 = sbr.rel (0) target = $region13
    $region12: #{tpu_custom_call.1} parent=1 // pred_region
      %s109 = ssub.s32 256, 256
      %110 = vsyncadd [#allocation3], %s109
      %s111 = sshll.u32 [#allocation2], 4
      %s112 = int_to_ptr.vmem [resolvable:$true] %s111
      %117 = dma.vmem_to_hbm [thread:$0]  %s112, 256, %s2, [#allocation3], 128, 128, 8
    $region13: #{tpu_custom_call.1} parent=1 // pred_fallthru
      _
    // Predicated region
    $region14: #{tpu_custom_call.1} parent=1 // pred_check
      _
    $region15: #{tpu_custom_call.1} parent=1 // pred_check_branch
      %119 = sbr.rel (0) target = $region17
    $region16: #{tpu_custom_call.1} parent=1 // pred_region
      %120 = dma.done [#allocation3], 256
    $region17: #{tpu_custom_call.1} parent=1 // pred_fallthru
      _
    %121 = vsyncpa [#allocation3], 1

</llo_original>
